<compile_context>
chip_gen: v5e
topology: v5e:2x2
jax: 0.10.0
libtpu: 0.0.40
codegen_flags: <defaults>
</compile_context>

<pallas_src>
import jax
import jax.numpy as jnp
import numpy as np
from jax.experimental import pallas as pl
from jax.experimental.pallas import tpu as pltpu


def _round_up(x, m):
    return ((x + m - 1) // m) * m


def _spectral_block_matmul_kernel(x_ref, w_ref, o_ref):
    """One real block-complex matmul per mode tile.

    x_ref : (TM, Bp,   Ci2p)  bf16  packed [real | imag] truncated rFFT of x
    w_ref : (TM, Ci2p, Co2p)  bf16  packed block-complex spectral weights
    o_ref : (TM, Bp,   Co2p)  f32   packed [real | imag] mixed spectrum
    """
    o_ref[...] = jnp.einsum(
        'mbi,mio->mbo', x_ref[...], w_ref[...],
        preferred_element_type=jnp.float32)


def _choose_mode_tile(modes, bp, ci2p, co2p, vmem_budget_bytes=8 * 1024 * 1024):
    """Largest mode tile whose double-buffered working set fits a conservative
    VMEM budget (safe under the 16 MiB v5e default scoped limit)."""
    per_mode = bp * ci2p * 2 + ci2p * co2p * 2 + bp * co2p * 4  # bf16 + bf16 + f32
    tm = max(1, vmem_budget_bytes // (2 * per_mode))            # 2 = double buffer
    return int(min(tm, modes, 256))


def spectral_conv1d(x, w_real, w_imag, modes):
    """Forward pass of SpectralConv1d.

    x       : (B, Cin, N) float32
    w_real  : (Cin, Cout, modes) float32  (real part of complex weight)
    w_imag  : (Cin, Cout, modes) float32  (imag part of complex weight)
    returns : (B, Cout, N) float32
    """
    B, Cin, N = x.shape
    Cin_w, Cout, M = w_real.shape
    assert Cin == Cin_w and M == modes
    K = N // 2 + 1  # number of rFFT frequencies
    assert modes <= K, "modes must not exceed N//2 + 1"

    # --- FFT (glue, plain JAX) -------------------------------------------
    # TODO(synk): FFT/IFFT have no Pallas TPU primitive; kept in XLA.
    x_ft = jnp.fft.rfft(x.astype(jnp.float32), axis=-1)        # (B, Cin, K) c64
    x_ft_m = x_ft[:, :, :modes]                                # keep low modes

    # --- block-complex packing in mode-major layout ----------------------
    # TODO(synk): the x-side transpose/pack is still an XLA op; weights could be
    # pre-packed once outside the hot loop.
    xr = jnp.transpose(jnp.real(x_ft_m), (2, 0, 1))            # (M, B, Cin)
    xi = jnp.transpose(jnp.imag(x_ft_m), (2, 0, 1))
    x_blk = jnp.concatenate([xr, xi], axis=-1)                 # (M, B, 2*Cin)

    wr = jnp.transpose(w_real, (2, 0, 1)).astype(jnp.float32)  # (M, Cin, Cout)
    wi = jnp.transpose(w_imag, (2, 0, 1)).astype(jnp.float32)
    w_blk = jnp.concatenate(
        [jnp.concatenate([wr, wi], axis=-1),
         jnp.concatenate([-wi, wr], axis=-1)],
        axis=1)                                                # (M, 2*Cin, 2*Cout)

    # --- pad to MXU / vreg friendly tiles ---------------------------------
    Bp = _round_up(B, 8)              # LHS sublane dim
    Ci2p = _round_up(2 * Cin, 128)    # contraction lane dim
    Co2p = _round_up(2 * Cout, 128)   # output lane dim (lane-dense stores)

    tm = _choose_mode_tile(modes, Bp, Ci2p, Co2p)
    Mp = _round_up(modes, tm)

    x_blk = jnp.pad(x_blk, ((0, Mp - modes), (0, Bp - B), (0, Ci2p - 2 * Cin)))
    w_blk = jnp.pad(w_blk, ((0, Mp - modes), (0, Ci2p - 2 * Cin),
                            (0, Co2p - 2 * Cout)))

    # bf16 operands, f32 MXU accumulation: halves HBM->VMEM DMA bytes and uses
    # the native bf16 MXU path on v6e/v7x.
    x_blk = x_blk.astype(jnp.bfloat16)
    w_blk = w_blk.astype(jnp.bfloat16)

    flops = 2 * Mp * Bp * Ci2p * Co2p
    bytes_accessed = (Mp * Bp * Ci2p * 2 + Mp * Ci2p * Co2p * 2
                      + Mp * Bp * Co2p * 4)

    # --- Pallas kernel: mode-tiled block-complex channel mixing ----------
    out_blk = pl.pallas_call(
        _spectral_block_matmul_kernel,
        out_shape=jax.ShapeDtypeStruct((Mp, Bp, Co2p), jnp.float32),
        grid_spec=pltpu.PrefetchScalarGridSpec(
            num_scalar_prefetch=0,
            grid=(Mp // tm,),
            in_specs=[
                pl.BlockSpec((tm, Bp, Ci2p), lambda m: (m, 0, 0)),
                pl.BlockSpec((tm, Ci2p, Co2p), lambda m: (m, 0, 0)),
            ],
            out_specs=pl.BlockSpec((tm, Bp, Co2p), lambda m: (m, 0, 0)),
        ),
        compiler_params=pltpu.CompilerParams(
            dimension_semantics=("parallel",),
        ),
        cost_estimate=pl.CostEstimate(
            flops=flops, transcendentals=0, bytes_accessed=bytes_accessed),
    )(x_blk, w_blk)

    # --- unpack, assemble spectrum and inverse FFT (glue) ----------------
    out_r = out_blk[:modes, :B, :Cout]                         # (M, B, Cout)
    out_i = out_blk[:modes, :B, Cout:2 * Cout]
    out_ft_m = jnp.transpose(out_r + 1j * out_i, (1, 2, 0)).astype(jnp.complex64)
    out_ft = jnp.zeros((B, Cout, K), dtype=jnp.complex64)
    out_ft = out_ft.at[:, :, :modes].set(out_ft_m)             # high modes = 0
    return jnp.fft.irfft(out_ft, n=N, axis=-1)                 # (B, Cout, N) f32


def spectral_conv1d_reference(x, w_real, w_imag, modes):
    """Pure-JAX f32 reference matching the PyTorch forward exactly."""
    B, Cin, N = x.shape
    Cout = w_real.shape[1]
    K = N // 2 + 1
    w = (w_real + 1j * w_imag).astype(jnp.complex64)
    x_ft = jnp.fft.rfft(x, axis=-1)
    out_ft = jnp.zeros((B, Cout, K), dtype=jnp.complex64)
    mixed = jnp.einsum('bim,iom->bom', x_ft[:, :, :modes], w[:, :, :modes])
    out_ft = out_ft.at[:, :, :modes].set(mixed)
    return jnp.fft.irfft(out_ft, n=N, axis=-1)


if __name__ == "__main__":
    # Small shapes consistent with SpectralConv1d(in_channels, out_channels, modes)
    B, Cin, Cout, N, modes = 2, 4, 8, 16, 6

    key = jax.random.PRNGKey(0)
    k_x, k_wr, k_wi = jax.random.split(key, 3)

    # Deterministic parameter init mirroring torch.randn(cfloat) * scale
    scale = 1.0 / (Cin * Cout)
    w_real = scale * jax.random.normal(k_wr, (Cin, Cout, modes), dtype=jnp.float32)
    w_imag = scale * jax.random.normal(k_wi, (Cin, Cout, modes), dtype=jnp.float32)

    x = jax.random.normal(k_x, (B, Cin, N), dtype=jnp.float32)

    y = spectral_conv1d(x, w_real, w_imag, modes)
    y = jax.block_until_ready(y)

    y_ref = jax.block_until_ready(spectral_conv1d_reference(x, w_real, w_imag, modes))
    # bf16 MXU operands with f32 accumulation -> relaxed tolerance vs f32 reference.
    np.testing.assert_allclose(np.asarray(y), np.asarray(y_ref), rtol=2e-2, atol=2e-2)
    assert y.shape == (B, Cout, N) and y.dtype == jnp.float32

    print("KERNEL_OK")
</pallas_src>

<mosaic_0001>
module attributes {stable_mosaic.version = 11 : i64} {
  func.func @_spectral_block_matmul_kernel(%arg0: i32, %arg1: memref<6x8x128xbf16, #tpu.memory_space<vmem>>, %arg2: memref<6x128x128xbf16, #tpu.memory_space<vmem>>, %arg3: memref<6x8x128xf32, #tpu.memory_space<vmem>>) attributes {dimension_semantics = [#tpu.dimension_semantics<parallel>], iteration_bounds = array<i64: 1>, scalar_prefetch = 0 : i64, scratch_operands = 0 : i64, tpu.core_type = #tpu.core_type<tc>, window_params = [{transform_indices = @transform_0, window_bounds = array<i64: 6, 8, 128>}, {transform_indices = @transform_1, window_bounds = array<i64: 6, 128, 128>}, {transform_indices = @transform_2, window_bounds = array<i64: 6, 8, 128>}]} {
    %c0 = arith.constant 0 : index
    %c0_0 = arith.constant 0 : index
    %c0_1 = arith.constant 0 : index
    %0 = vector.load %arg1[%c0, %c0_0, %c0_1] : memref<6x8x128xbf16, #tpu.memory_space<vmem>>, vector<6x8x128xbf16>
    %c0_2 = arith.constant 0 : index
    %c0_3 = arith.constant 0 : index
    %c0_4 = arith.constant 0 : index
    %1 = vector.load %arg2[%c0_2, %c0_3, %c0_4] : memref<6x128x128xbf16, #tpu.memory_space<vmem>>, vector<6x128x128xbf16>
    "tpu.trace_start"() <{level = 10 : i32, message = "mbi,mio->mbo"}> : () -> ()
    %cst = arith.constant dense<0.000000e+00> : vector<6x8x128xf32>
    %2 = tpu.matmul %0, %1, %cst {dimension_numbers = #tpu.dot_dimension_numbers<[2], [1], [1], [2], [0, 0, 0, 1, 1, 2], [0], [0]>} : vector<6x8x128xbf16>, vector<6x128x128xbf16>, vector<6x8x128xf32> -> vector<6x8x128xf32>
    "tpu.trace_stop"() : () -> ()
    %c0_5 = arith.constant 0 : index
    %c0_6 = arith.constant 0 : index
    %c0_7 = arith.constant 0 : index
    %3 = vector.load %arg3[%c0_5, %c0_6, %c0_7] : memref<6x8x128xf32, #tpu.memory_space<vmem>>, vector<6x8x128xf32>
    tpu.vector_store %arg3[%c0_5, %c0_6, %c0_7], %2 {strides = array<i32>} : memref<6x8x128xf32, #tpu.memory_space<vmem>>, vector<6x8x128xf32>,
    return
  }
  func.func @transform_0(%arg0: i32) -> (i32, i32, i32) {
    %c0_i32 = arith.constant 0 : i32
    %c0_i32_0 = arith.constant 0 : i32
    %c0_i32_1 = arith.constant 0 : i32
    return %arg0, %c0_i32, %c0_i32_0 : i32, i32, i32
  }
  func.func @transform_1(%arg0: i32) -> (i32, i32, i32) {
    %c0_i32 = arith.constant 0 : i32
    %c0_i32_0 = arith.constant 0 : i32
    %c0_i32_1 = arith.constant 0 : i32
    return %arg0, %c0_i32, %c0_i32_0 : i32, i32, i32
  }
  func.func @transform_2(%arg0: i32) -> (i32, i32, i32) {
    %c0_i32 = arith.constant 0 : i32
    %c0_i32_0 = arith.constant 0 : i32
    %c0_i32_1 = arith.constant 0 : i32
    return %arg0, %c0_i32, %c0_i32_0 : i32, i32, i32
  }
}

</mosaic_0001>

<llo_original>
// kernel: tpu_custom_call.1
$region0: #{tpu_custom_call.1}
  #allocation0 [shape = 'u32[]', space=smem, size = 0x4, offset = 0x4, fixed_abs, tag = 'smem constant byte address 0x4 - core index']
  #allocation1 [shape = 'u32[72,128]{1,0:T(1,128)}', space=vmem, size = 0x9000, scoped, tag = 'internal scratch']
  %s0 = inlined_call_operand.hbm [shape: bf16[6,8,128], index: 0, kind: input, shape index: {}]
  %s1 = inlined_call_operand.hbm [shape: bf16[6,128,128], index: 1, kind: input, shape index: {}]
  %s2 = inlined_call_operand.hbm [shape: f32[6,8,128], index: 2, kind: output, shape index: {}]
  %s3 = sld [smem:[#allocation0]]
  $region26: #{tpu_custom_call.1} parent=0
    _
  %s5 = ssub.s32 1, %s3
  %s6 = scalar_select 0, %s5, %s3
  $region1: #{tpu_custom_call.1} parent=0
    #allocation2 [shape = 'u8[12288]{0}', space=vmem, size = 0x3000, scoped, tag = 'input window, operand 0, single buffered']
    #allocation3 [shape = 's32[1]{0}', space=sflag, size = 0x4, scoped, tag = 'scoped memory for tpu_custom_call.1']
    #allocation4 [shape = 's32[1]{0}', space=sflag, size = 0x4, scoped, tag = 'scoped memory for tpu_custom_call.1']
    #allocation5 [shape = 'u8[196608]{0}', space=vmem, size = 0x30000, scoped, tag = 'input window, operand 1, single buffered']
    #allocation6 [shape = 's32[1]{0}', space=sflag, size = 0x4, scoped, tag = 'scoped memory for tpu_custom_call.1']
    #allocation7 [shape = 'u8[24576]{0}', space=vmem, size = 0x6000, scoped, tag = 'output window, operand 0, single buffered']
    %7 = vsyncpa [#allocation3], 0
    %8 = vsyncpa [#allocation6], 0
    %9 = vsyncpa [#allocation4], 0
    // Predicated region
    $region2: #{tpu_custom_call.1} parent=1 // pred_check
      _
    $region3: #{tpu_custom_call.1} parent=1 // pred_check_branch
      %11 = sbr.rel (0) target = $region5
    $region4: #{tpu_custom_call.1} parent=1 // pred_region
      %13 = vsyncadd [#allocation3], 0
      %s14 = sshll.u32 %s0, 4
      %s15 = int_to_ptr.hbm [resolvable:$true] %s14
      %s16 = sshll.u32 [#allocation2], 4
      %s17 = int_to_ptr.vmem [resolvable:$true] %s16
      %22 = dma.hbm_to_vmem [thread:$0]  %s15, 384, %s17, [#allocation3], 64, 64, 4
    $region5: #{tpu_custom_call.1} parent=1 // pred_fallthru
      _
    // Predicated region
    $region6: #{tpu_custom_call.1} parent=1 // pred_check
      _
    $region7: #{tpu_custom_call.1} parent=1 // pred_check_branch
      %24 = sbr.rel (0) target = $region9
    $region8: #{tpu_custom_call.1} parent=1 // pred_region
      %26 = vsyncadd [#allocation6], 0
      %s27 = sshll.u32 %s1, 4
      %s28 = int_to_ptr.hbm [resolvable:$true] %s27
      %s29 = sshll.u32 [#allocation5], 4
      %s30 = int_to_ptr.vmem [resolvable:$true] %s29
      %35 = dma.hbm_to_vmem [thread:$0]  %s28, 6144, %s30, [#allocation6], 64, 64, 4
    $region9: #{tpu_custom_call.1} parent=1 // pred_fallthru
      _
    // Predicated region
    $region10: #{tpu_custom_call.1} parent=1 // pred_check
      _
    $region11: #{tpu_custom_call.1} parent=1 // pred_check_branch
      %37 = sbr.rel (0) target = $region13
    $region12: #{tpu_custom_call.1} parent=1 // pred_region
      %39 = dma.done [#allocation3], 384
    $region13: #{tpu_custom_call.1} parent=1 // pred_fallthru
      _
    // Predicated region
    $region14: #{tpu_custom_call.1} parent=1 // pred_check
      _
    $region15: #{tpu_custom_call.1} parent=1 // pred_check_branch
      %41 = sbr.rel (0) target = $region17
    $region16: #{tpu_custom_call.1} parent=1 // pred_region
      %43 = dma.done [#allocation6], 6144
    $region17: #{tpu_custom_call.1} parent=1 // pred_fallthru
      _
    %v44 = vld [vmem:[#allocation2] sm:$0xf]
    %v45 = vld [vmem:[#allocation2 + $0x4] sm:$0xf]
    %v46 = vld [vmem:[#allocation2 + $0x8] sm:$0xf]
    %v47 = vld [vmem:[#allocation2 + $0xc] sm:$0xf]
    %v48 = vld [vmem:[#allocation2 + $0x10] sm:$0xf]
    %v49 = vld [vmem:[#allocation2 + $0x14] sm:$0xf]
    %v50 = vld [vmem:[#allocation5] sm:$0xf]
    %v51 = vld [vmem:[#allocation5 + $0x4] sm:$0xf]
    %v52 = vld [vmem:[#allocation5 + $0x8] sm:$0xf]
    %v53 = vld [vmem:[#allocation5 + $0xc] sm:$0xf]
    %v54 = vld [vmem:[#allocation5 + $0x10] sm:$0xf]
    %v55 = vld [vmem:[#allocation5 + $0x14] sm:$0xf]
    %v56 = vld [vmem:[#allocation5 + $0x18] sm:$0xf]
    %v57 = vld [vmem:[#allocation5 + $0x1c] sm:$0xf]
    %v58 = vld [vmem:[#allocation5 + $0x20] sm:$0xf]
    %v59 = vld [vmem:[#allocation5 + $0x24] sm:$0xf]
    %v60 = vld [vmem:[#allocation5 + $0x28] sm:$0xf]
    %v61 = vld [vmem:[#allocation5 + $0x2c] sm:$0xf]
    %v62 = vld [vmem:[#allocation5 + $0x30] sm:$0xf]
    %v63 = vld [vmem:[#allocation5 + $0x34] sm:$0xf]
    %v64 = vld [vmem:[#allocation5 + $0x38] sm:$0xf]
    %v65 = vld [vmem:[#allocation5 + $0x3c] sm:$0xf]
    %v66 = vld [vmem:[#allocation5 + $0x40] sm:$0xf]
    %v67 = vld [vmem:[#allocation5 + $0x44] sm:$0xf]
    %v68 = vld [vmem:[#allocation5 + $0x48] sm:$0xf]
    %v69 = vld [vmem:[#allocation5 + $0x4c] sm:$0xf]
    %v70 = vld [vmem:[#allocation5 + $0x50] sm:$0xf]
    %v71 = vld [vmem:[#allocation5 + $0x54] sm:$0xf]
    %v72 = vld [vmem:[#allocation5 + $0x58] sm:$0xf]
    %v73 = vld [vmem:[#allocation5 + $0x5c] sm:$0xf]
    %v74 = vld [vmem:[#allocation5 + $0x60] sm:$0xf]
    %v75 = vld [vmem:[#allocation5 + $0x64] sm:$0xf]
    %v76 = vld [vmem:[#allocation5 + $0x68] sm:$0xf]
    %v77 = vld [vmem:[#allocation5 + $0x6c] sm:$0xf]
    %v78 = vld [vmem:[#allocation5 + $0x70] sm:$0xf]
    %v79 = vld [vmem:[#allocation5 + $0x74] sm:$0xf]
    %v80 = vld [vmem:[#allocation5 + $0x78] sm:$0xf]
    %v81 = vld [vmem:[#allocation5 + $0x7c] sm:$0xf]
    %v82 = vld [vmem:[#allocation5 + $0x80] sm:$0xf]
    %v83 = vld [vmem:[#allocation5 + $0x84] sm:$0xf]
    %v84 = vld [vmem:[#allocation5 + $0x88] sm:$0xf]
    %v85 = vld [vmem:[#allocation5 + $0x8c] sm:$0xf]
    %v86 = vld [vmem:[#allocation5 + $0x90] sm:$0xf]
    %v87 = vld [vmem:[#allocation5 + $0x94] sm:$0xf]
    %v88 = vld [vmem:[#allocation5 + $0x98] sm:$0xf]
    %v89 = vld [vmem:[#allocation5 + $0x9c] sm:$0xf]
    %v90 = vld [vmem:[#allocation5 + $0xa0] sm:$0xf]
    %v91 = vld [vmem:[#allocation5 + $0xa4] sm:$0xf]
    %v92 = vld [vmem:[#allocation5 + $0xa8] sm:$0xf]
    %v93 = vld [vmem:[#allocation5 + $0xac] sm:$0xf]
    %v94 = vld [vmem:[#allocation5 + $0xb0] sm:$0xf]
    %v95 = vld [vmem:[#allocation5 + $0xb4] sm:$0xf]
    %v96 = vld [vmem:[#allocation5 + $0xb8] sm:$0xf]
    %v97 = vld [vmem:[#allocation5 + $0xbc] sm:$0xf]
    %v98 = vld [vmem:[#allocation5 + $0xc0] sm:$0xf]
    %v99 = vld [vmem:[#allocation5 + $0xc4] sm:$0xf]
    %v100 = vld [vmem:[#allocation5 + $0xc8] sm:$0xf]
    %v101 = vld [vmem:[#allocation5 + $0xcc] sm:$0xf]
    %v102 = vld [vmem:[#allocation5 + $0xd0] sm:$0xf]
    %v103 = vld [vmem:[#allocation5 + $0xd4] sm:$0xf]
    %v104 = vld [vmem:[#allocation5 + $0xd8] sm:$0xf]
    %v105 = vld [vmem:[#allocation5 + $0xdc] sm:$0xf]
    %v106 = vld [vmem:[#allocation5 + $0xe0] sm:$0xf]
    %v107 = vld [vmem:[#allocation5 + $0xe4] sm:$0xf]
    %v108 = vld [vmem:[#allocation5 + $0xe8] sm:$0xf]
    %v109 = vld [vmem:[#allocation5 + $0xec] sm:$0xf]
    %v110 = vld [vmem:[#allocation5 + $0xf0] sm:$0xf]
    %v111 = vld [vmem:[#allocation5 + $0xf4] sm:$0xf]
    %v112 = vld [vmem:[#allocation5 + $0xf8] sm:$0xf]
    %v113 = vld [vmem:[#allocation5 + $0xfc] sm:$0xf]
    %v114 = vld [vmem:[#allocation5 + $0x100] sm:$0xf]
    %v115 = vld [vmem:[#allocation5 + $0x104] sm:$0xf]
    %v116 = vld [vmem:[#allocation5 + $0x108] sm:$0xf]
    %v117 = vld [vmem:[#allocation5 + $0x10c] sm:$0xf]
    %v118 = vld [vmem:[#allocation5 + $0x110] sm:$0xf]
    %v119 = vld [vmem:[#allocation5 + $0x114] sm:$0xf]
    %v120 = vld [vmem:[#allocation5 + $0x118] sm:$0xf]
    %v121 = vld [vmem:[#allocation5 + $0x11c] sm:$0xf]
    %v122 = vld [vmem:[#allocation5 + $0x120] sm:$0xf]
    %v123 = vld [vmem:[#allocation5 + $0x124] sm:$0xf]
    %v124 = vld [vmem:[#allocation5 + $0x128] sm:$0xf]
    %v125 = vld [vmem:[#allocation5 + $0x12c] sm:$0xf]
    %v126 = vld [vmem:[#allocation5 + $0x130] sm:$0xf]
    %v127 = vld [vmem:[#allocation5 + $0x134] sm:$0xf]
    %v128 = vld [vmem:[#allocation5 + $0x138] sm:$0xf]
    %v129 = vld [vmem:[#allocation5 + $0x13c] sm:$0xf]
    %v130 = vld [vmem:[#allocation5 + $0x140] sm:$0xf]
    %v131 = vld [vmem:[#allocation5 + $0x144] sm:$0xf]
    %v132 = vld [vmem:[#allocation5 + $0x148] sm:$0xf]
    %v133 = vld [vmem:[#allocation5 + $0x14c] sm:$0xf]
    %v134 = vld [vmem:[#allocation5 + $0x150] sm:$0xf]
    %v135 = vld [vmem:[#allocation5 + $0x154] sm:$0xf]
    %v136 = vld [vmem:[#allocation5 + $0x158] sm:$0xf]
    %v137 = vld [vmem:[#allocation5 + $0x15c] sm:$0xf]
    %v138 = vld [vmem:[#allocation5 + $0x160] sm:$0xf]
    %v139 = vld [vmem:[#allocation5 + $0x164] sm:$0xf]
    %v140 = vld [vmem:[#allocation5 + $0x168] sm:$0xf]
    %v141 = vld [vmem:[#allocation5 + $0x16c] sm:$0xf]
    %v142 = vld [vmem:[#allocation5 + $0x170] sm:$0xf]
    %v143 = vld [vmem:[#allocation5 + $0x174] sm:$0xf]
    %v144 = vld [vmem:[#allocation5 + $0x178] sm:$0xf]
    %v145 = vld [vmem:[#allocation5 + $0x17c] sm:$0xf]
    %v162 = vunpack.c.l.b16 %v50
    %v163 = vunpack.c.l.b16 %v51
    %v164 = vunpack.c.l.b16 %v52
    %v165 = vunpack.c.l.b16 %v53
    %v166 = vunpack.c.l.b16 %v54
    %v167 = vunpack.c.l.b16 %v55
    %v168 = vunpack.c.l.b16 %v56
    %v169 = vunpack.c.l.b16 %v57
    %v170 = vunpack.c.l.b16 %v58
    %v171 = vunpack.c.l.b16 %v59
    %v172 = vunpack.c.l.b16 %v60
    %v173 = vunpack.c.l.b16 %v61
    %v174 = vunpack.c.l.b16 %v62
    %v175 = vunpack.c.l.b16 %v63
    %v176 = vunpack.c.l.b16 %v64
    %v177 = vunpack.c.l.b16 %v65
    %v178 = vpack.c.b16 %v163, %v162
    %v179 = vpack.c.b16 %v165, %v164
    %v180 = vpack.c.b16 %v167, %v166
    %v181 = vpack.c.b16 %v169, %v168
    %v182 = vpack.c.b16 %v171, %v170
    %v183 = vpack.c.b16 %v173, %v172
    %v184 = vpack.c.b16 %v175, %v174
    %v185 = vpack.c.b16 %v177, %v176
    %194 = vmatpush.bf16.msra.mxu0 %v185
    %195 = vmatpush.bf16.msra.mxu0 %v184
    %196 = vmatpush.bf16.msra.mxu0 %v183
    %197 = vmatpush.bf16.msra.mxu0 %v182
    %198 = vmatpush.bf16.msra.mxu0 %v181
    %199 = vmatpush.bf16.msra.mxu0 %v180
    %200 = vmatpush.bf16.msra.mxu0 %v179
    %201 = vmatpush.bf16.msra.mxu0 %v178
    %202 = vmatmul.bf16.gmra.mxu0 %v44
    %v203 = vpop.f32.mrf.mxu0
    %v204 = vadd.f32 0.0, %v203
    %v205 = vpop.f32.mrf.mxu0
    %206 = vdwg.mxu0
    %v223 = vunpack.c.l.b16 %v66
    %v224 = vunpack.c.l.b16 %v67
    %v225 = vunpack.c.l.b16 %v68
    %v226 = vunpack.c.l.b16 %v69
    %v227 = vunpack.c.l.b16 %v70
    %v228 = vunpack.c.l.b16 %v71
    %v229 = vunpack.c.l.b16 %v72
    %v230 = vunpack.c.l.b16 %v73
    %v231 = vunpack.c.l.b16 %v74
    %v232 = vunpack.c.l.b16 %v75
    %v233 = vunpack.c.l.b16 %v76
    %v234 = vunpack.c.l.b16 %v77
    %v235 = vunpack.c.l.b16 %v78
    %v236 = vunpack.c.l.b16 %v79
    %v237 = vunpack.c.l.b16 %v80
    %v238 = vunpack.c.l.b16 %v81
    %v239 = vpack.c.b16 %v224, %v223
    %v240 = vpack.c.b16 %v226, %v225
    %v241 = vpack.c.b16 %v228, %v227
    %v242 = vpack.c.b16 %v230, %v229
    %v243 = vpack.c.b16 %v232, %v231
    %v244 = vpack.c.b16 %v234, %v233
    %v245 = vpack.c.b16 %v236, %v235
    %v246 = vpack.c.b16 %v238, %v237
    %255 = vmatpush.bf16.msra.mxu0 %v246
    %256 = vmatpush.bf16.msra.mxu0 %v245
    %257 = vmatpush.bf16.msra.mxu0 %v244
    %258 = vmatpush.bf16.msra.mxu0 %v243
    %259 = vmatpush.bf16.msra.mxu0 %v242
    %260 = vmatpush.bf16.msra.mxu0 %v241
    %261 = vmatpush.bf16.msra.mxu0 %v240
    %262 = vmatpush.bf16.msra.mxu0 %v239
    %263 = vmatmul.bf16.gmra.mxu0 %v45
    %v264 = vpop.f32.mrf.mxu0
    %v265 = vadd.f32 0.0, %v264
    %v266 = vpop.f32.mrf.mxu0
    %267 = vdwg.mxu0
    %v284 = vunpack.c.l.b16 %v82
    %v285 = vunpack.c.l.b16 %v83
    %v286 = vunpack.c.l.b16 %v84
    %v287 = vunpack.c.l.b16 %v85
    %v288 = vunpack.c.l.b16 %v86
    %v289 = vunpack.c.l.b16 %v87
    %v290 = vunpack.c.l.b16 %v88
    %v291 = vunpack.c.l.b16 %v89
    %v292 = vunpack.c.l.b16 %v90
    %v293 = vunpack.c.l.b16 %v91
    %v294 = vunpack.c.l.b16 %v92
    %v295 = vunpack.c.l.b16 %v93
    %v296 = vunpack.c.l.b16 %v94
    %v297 = vunpack.c.l.b16 %v95
    %v298 = vunpack.c.l.b16 %v96
    %v299 = vunpack.c.l.b16 %v97
    %v300 = vpack.c.b16 %v285, %v284
    %v301 = vpack.c.b16 %v287, %v286
    %v302 = vpack.c.b16 %v289, %v288
    %v303 = vpack.c.b16 %v291, %v290
    %v304 = vpack.c.b16 %v293, %v292
    %v305 = vpack.c.b16 %v295, %v294
    %v306 = vpack.c.b16 %v297, %v296
    %v307 = vpack.c.b16 %v299, %v298
    %316 = vmatpush.bf16.msra.mxu0 %v307
    %317 = vmatpush.bf16.msra.mxu0 %v306
    %318 = vmatpush.bf16.msra.mxu0 %v305
    %319 = vmatpush.bf16.msra.mxu0 %v304
    %320 = vmatpush.bf16.msra.mxu0 %v303
    %321 = vmatpush.bf16.msra.mxu0 %v302
    %322 = vmatpush.bf16.msra.mxu0 %v301
    %323 = vmatpush.bf16.msra.mxu0 %v300
    %324 = vmatmul.bf16.gmra.mxu0 %v46
    %v325 = vpop.f32.mrf.mxu0
    %v326 = vadd.f32 0.0, %v325
    %v327 = vpop.f32.mrf.mxu0
    %328 = vdwg.mxu0
    %v345 = vunpack.c.l.b16 %v98
    %v346 = vunpack.c.l.b16 %v99
    %v347 = vunpack.c.l.b16 %v100
    %v348 = vunpack.c.l.b16 %v101
    %v349 = vunpack.c.l.b16 %v102
    %v350 = vunpack.c.l.b16 %v103
    %v351 = vunpack.c.l.b16 %v104
    %v352 = vunpack.c.l.b16 %v105
    %v353 = vunpack.c.l.b16 %v106
    %v354 = vunpack.c.l.b16 %v107
    %v355 = vunpack.c.l.b16 %v108
    %v356 = vunpack.c.l.b16 %v109
    %v357 = vunpack.c.l.b16 %v110
    %v358 = vunpack.c.l.b16 %v111
    %v359 = vunpack.c.l.b16 %v112
    %v360 = vunpack.c.l.b16 %v113
    %v361 = vpack.c.b16 %v346, %v345
    %v362 = vpack.c.b16 %v348, %v347
    %v363 = vpack.c.b16 %v350, %v349
    %v364 = vpack.c.b16 %v352, %v351
    %v365 = vpack.c.b16 %v354, %v353
    %v366 = vpack.c.b16 %v356, %v355
    %v367 = vpack.c.b16 %v358, %v357
    %v368 = vpack.c.b16 %v360, %v359
    %377 = vmatpush.bf16.msra.mxu0 %v368
    %378 = vmatpush.bf16.msra.mxu0 %v367
    %379 = vmatpush.bf16.msra.mxu0 %v366
    %380 = vmatpush.bf16.msra.mxu0 %v365
    %381 = vmatpush.bf16.msra.mxu0 %v364
    %382 = vmatpush.bf16.msra.mxu0 %v363
    %383 = vmatpush.bf16.msra.mxu0 %v362
    %384 = vmatpush.bf16.msra.mxu0 %v361
    %385 = vmatmul.bf16.gmra.mxu0 %v47
    %v386 = vpop.f32.mrf.mxu0
    %v387 = vadd.f32 0.0, %v386
    %v388 = vpop.f32.mrf.mxu0
    %389 = vdwg.mxu0
    %v406 = vunpack.c.l.b16 %v114
    %v407 = vunpack.c.l.b16 %v115
    %v408 = vunpack.c.l.b16 %v116
    %v409 = vunpack.c.l.b16 %v117
    %v410 = vunpack.c.l.b16 %v118
    %v411 = vunpack.c.l.b16 %v119
    %v412 = vunpack.c.l.b16 %v120
    %v413 = vunpack.c.l.b16 %v121
    %v414 = vunpack.c.l.b16 %v122
    %v415 = vunpack.c.l.b16 %v123
    %v416 = vunpack.c.l.b16 %v124
    %v417 = vunpack.c.l.b16 %v125
    %v418 = vunpack.c.l.b16 %v126
    %v419 = vunpack.c.l.b16 %v127
    %v420 = vunpack.c.l.b16 %v128
    %v421 = vunpack.c.l.b16 %v129
    %v422 = vpack.c.b16 %v407, %v406
    %v423 = vpack.c.b16 %v409, %v408
    %v424 = vpack.c.b16 %v411, %v410
    %v425 = vpack.c.b16 %v413, %v412
    %v426 = vpack.c.b16 %v415, %v414
    %v427 = vpack.c.b16 %v417, %v416
    %v428 = vpack.c.b16 %v419, %v418
    %v429 = vpack.c.b16 %v421, %v420
    %438 = vmatpush.bf16.msra.mxu0 %v429
    %439 = vmatpush.bf16.msra.mxu0 %v428
    %440 = vmatpush.bf16.msra.mxu0 %v427
    %441 = vmatpush.bf16.msra.mxu0 %v426
    %442 = vmatpush.bf16.msra.mxu0 %v425
    %443 = vmatpush.bf16.msra.mxu0 %v424
    %444 = vmatpush.bf16.msra.mxu0 %v423
    %445 = vmatpush.bf16.msra.mxu0 %v422
    %446 = vmatmul.bf16.gmra.mxu0 %v48
    %v447 = vpop.f32.mrf.mxu0
    %v448 = vadd.f32 0.0, %v447
    %v449 = vpop.f32.mrf.mxu0
    %450 = vdwg.mxu0
    %v467 = vunpack.c.l.b16 %v130
    %v468 = vunpack.c.l.b16 %v131
    %v469 = vunpack.c.l.b16 %v132
    %v470 = vunpack.c.l.b16 %v133
    %v471 = vunpack.c.l.b16 %v134
    %v472 = vunpack.c.l.b16 %v135
    %v473 = vunpack.c.l.b16 %v136
    %v474 = vunpack.c.l.b16 %v137
    %v475 = vunpack.c.l.b16 %v138
    %v476 = vunpack.c.l.b16 %v139
    %v477 = vunpack.c.l.b16 %v140
    %v478 = vunpack.c.l.b16 %v141
    %v479 = vunpack.c.l.b16 %v142
    %v480 = vunpack.c.l.b16 %v143
    %v481 = vunpack.c.l.b16 %v144
    %v482 = vunpack.c.l.b16 %v145
    %v483 = vpack.c.b16 %v468, %v467
    %v484 = vpack.c.b16 %v470, %v469
    %v485 = vpack.c.b16 %v472, %v471
    %v486 = vpack.c.b16 %v474, %v473
    %v487 = vpack.c.b16 %v476, %v475
    %v488 = vpack.c.b16 %v478, %v477
    %v489 = vpack.c.b16 %v480, %v479
    %v490 = vpack.c.b16 %v482, %v481
    %499 = vmatpush.bf16.msra.mxu0 %v490
    %500 = vmatpush.bf16.msra.mxu0 %v489
    %501 = vmatpush.bf16.msra.mxu0 %v488
    %502 = vmatpush.bf16.msra.mxu0 %v487
    %503 = vmatpush.bf16.msra.mxu0 %v486
    %504 = vmatpush.bf16.msra.mxu0 %v485
    %505 = vmatpush.bf16.msra.mxu0 %v484
    %506 = vmatpush.bf16.msra.mxu0 %v483
    %507 = vmatmul.bf16.gmra.mxu0 %v49
    %v508 = vpop.f32.mrf.mxu0
    %v509 = vadd.f32 0.0, %v508
    %v510 = vpop.f32.mrf.mxu0
    %511 = vdwg.mxu0
    %512 = vst [vmem:[#allocation7] sm:$0xff] %v204
    %513 = vst [vmem:[#allocation7 + $0x8] sm:$0xff] %v265
    %514 = vst [vmem:[#allocation7 + $0x10] sm:$0xff] %v326
    %515 = vst [vmem:[#allocation7 + $0x18] sm:$0xff] %v387
    %516 = vst [vmem:[#allocation7 + $0x20] sm:$0xff] %v448
    %517 = vst [vmem:[#allocation7 + $0x28] sm:$0xff] %v509
    // Predicated region
    $region18: #{tpu_custom_call.1} parent=1 // pred_check
      _
    $region19: #{tpu_custom_call.1} parent=1 // pred_check_branch
      %519 = sbr.rel (0) target = $region21
    $region20: #{tpu_custom_call.1} parent=1 // pred_region
      %521 = vsyncadd [#allocation4], 0
      %s522 = sshll.u32 [#allocation7], 4
      %s523 = int_to_ptr.vmem [resolvable:$true] %s522
      %s524 = sshll.u32 %s2, 4
      %s525 = int_to_ptr.hbm [resolvable:$true] %s524
      %530 = dma.vmem_to_hbm [thread:$0]  %s523, 768, %s525, [#allocation4], 128, 128, 8
    $region21: #{tpu_custom_call.1} parent=1 // pred_fallthru
      _
    // Predicated region
    $region22: #{tpu_custom_call.1} parent=1 // pred_check
      _
    $region23: #{tpu_custom_call.1} parent=1 // pred_check_branch
      %532 = sbr.rel (0) target = $region25
    $region24: #{tpu_custom_call.1} parent=1 // pred_region
      %534 = dma.done [#allocation4], 768
    $region25: #{tpu_custom_call.1} parent=1 // pred_fallthru
      _
    %535 = vsyncpa [#allocation3], 1
    %536 = vsyncpa [#allocation6], 1
    %537 = vsyncpa [#allocation4], 1

</llo_original>
